<compile_context>
chip_gen: v7x
topology: tpu7x:2x2x1
jax: 0.10.0
libtpu: 0.0.40
codegen_flags: <defaults>
</compile_context>

<pallas_src>
import functools

import jax
import jax.numpy as jnp
from jax.experimental import pallas as pl
from jax.experimental.pallas import tpu as pltpu


def _round_up(x, m):
    return (x + m - 1) // m * m


def _choose_row_tile(rows, d, itemsize, n_splits,
                     vmem_budget_bytes=10 * 1024 * 1024, max_tile=4096):
    """Pick a row tile: as big as fits the VMEM budget for double-buffered
    pred+target tiles, multiple of 256, not (much) larger than the per-core
    share of rows. Budget stays under the 16 MiB v5e default scoped limit."""
    per_row = 2 * 2 * d * itemsize          # 2 arrays x 2 pipeline buffers
    tile = vmem_budget_bytes // max(per_row, 1)
    tile = max(256, min(max_tile, (tile // 256) * 256))
    per_core = _round_up(pl.cdiv(rows, n_splits), 256)
    return int(min(tile, max(256, per_core)))


def _masked_mse_kernel(pred_ref, target_ref, mask_ref,
                       loss_sum_ref, mask_sum_ref, *, norm_pix_loss):
    i = pl.program_id(1)  # reduction axis ("arbitrary")

    @pl.when(i == 0)
    def _():
        loss_sum_ref[...] = jnp.zeros_like(loss_sum_ref)
        mask_sum_ref[...] = jnp.zeros_like(mask_sum_ref)

    pred = pred_ref[...].astype(jnp.float32)      # (TILE, D)
    target = target_ref[...].astype(jnp.float32)  # (TILE, D)
    mask = mask_ref[...].astype(jnp.float32)      # (TILE, 1)

    d = target.shape[-1]
    if norm_pix_loss:
        inv_d = 1.0 / d
        mean = jnp.sum(target, axis=-1, keepdims=True) * inv_d
        ex2 = jnp.sum(target * target, axis=-1, keepdims=True) * inv_d
        # one-pass unbiased variance (torch.var default correction=1), clamped
        var = jnp.maximum(ex2 - mean * mean, 0.0) * (float(d) / float(d - 1))
        target = (target - mean) * jax.lax.rsqrt(var + 1e-6)

    diff = pred - target
    sq = diff * diff
    # Fused masked reduction (mask broadcast over lanes); division by D and by
    # sum(mask) is deferred to the wrapper.
    loss_sum_ref[...] += jnp.sum(sq * mask).reshape(1, 1, 1)
    mask_sum_ref[...] += jnp.sum(mask).reshape(1, 1, 1)


def masked_mse(pred, mask, target, *, norm_pix_loss=False, pix_masked=True,
               row_tile=None):
    """pred/target: [N, L, D]; mask: [N, L] (1 = masked patch counted in loss)."""
    n, l, d = pred.shape
    rows = n * l

    # Keep native dtype in HBM (bf16 halves the bytes moved); upcast in-kernel.
    pred2 = pred.reshape(rows, d)
    target2 = target.reshape(rows, d)

    if pix_masked:
        eff_mask = mask.reshape(rows).astype(jnp.float32)
    else:
        # unmasked mean over all real patches == masked mean with all-ones mask
        eff_mask = jnp.ones((rows,), dtype=jnp.float32)

    n_splits = 2  # lets v7x use both TensorCores; harmless on v5e/v6e (1 TC)

    itemsize = max(jnp.dtype(pred.dtype).itemsize,
                   jnp.dtype(target.dtype).itemsize)
    if row_tile is None:
        row_tile = _choose_row_tile(rows, d, itemsize, n_splits)
    assert row_tile % 8 == 0

    # Pad rows so the grid tiles evenly; padded rows carry mask == 0.
    chunk = n_splits * row_tile
    rows_padded = _round_up(rows, chunk)
    pad = rows_padded - rows
    if pad:
        pred2 = jnp.pad(pred2, ((0, pad), (0, 0)))
        target2 = jnp.pad(target2, ((0, pad), (0, 0)))
        eff_mask = jnp.pad(eff_mask, ((0, pad),))
    mask2 = eff_mask.reshape(rows_padded, 1)

    steps = rows_padded // chunk

    # Only raise the scoped VMEM limit if an explicitly huge tile needs it;
    # cap well under v7x's 64 MiB physical VMEM.
    in_bytes = 2 * 2 * row_tile * d * itemsize + 2 * row_tile * 128 * 4
    vmem_limit = None
    if in_bytes > 12 * 1024 * 1024:
        vmem_limit = min(2 * in_bytes, 56 * 1024 * 1024)

    kernel = functools.partial(_masked_mse_kernel, norm_pix_loss=norm_pix_loss)

    loss_sum, mask_sum = pl.pallas_call(
        kernel,
        out_shape=(
            jax.ShapeDtypeStruct((n_splits, 1, 1), jnp.float32),
            jax.ShapeDtypeStruct((n_splits, 1, 1), jnp.float32),
        ),
        grid_spec=pltpu.PrefetchScalarGridSpec(
            num_scalar_prefetch=0,
            grid=(n_splits, steps),
            in_specs=[
                pl.BlockSpec((row_tile, d), lambda c, i: (c * steps + i, 0)),
                pl.BlockSpec((row_tile, d), lambda c, i: (c * steps + i, 0)),
                pl.BlockSpec((row_tile, 1), lambda c, i: (c * steps + i, 0)),
            ],
            out_specs=[
                pl.BlockSpec((1, 1, 1), lambda c, i: (c, 0, 0)),
                pl.BlockSpec((1, 1, 1), lambda c, i: (c, 0, 0)),
            ],
        ),
        compiler_params=pltpu.CompilerParams(
            dimension_semantics=("parallel", "arbitrary"),
            vmem_limit_bytes=vmem_limit),
    )(pred2, target2, mask2)

    # Combine per-core partials; divide by D (deferred) and by sum(mask).
    return (jnp.sum(loss_sum) / d) / jnp.sum(mask_sum)


def _masked_mse_ref(pred, mask, target, *, norm_pix_loss=False, pix_masked=True):
    pred = pred.astype(jnp.float32)
    target = target.astype(jnp.float32)
    if norm_pix_loss:
        mean = target.mean(axis=-1, keepdims=True)
        var = jnp.var(target, axis=-1, keepdims=True, ddof=1)
        target = (target - mean) / (var + 1e-6) ** 0.5
    loss = (pred - target) ** 2
    loss = loss.mean(axis=-1)
    if pix_masked:
        return (loss * mask).sum() / mask.sum()
    return loss.mean()


if __name__ == "__main__":
    ok = True

    # Case 1: small MAE-like shape, f32, auto row tile.
    k1, k2, k3 = jax.random.split(jax.random.PRNGKey(0), 3)
    N, L, D = 2, 64, 128
    pred = jax.random.normal(k1, (N, L, D), dtype=jnp.float32)
    target = jax.random.normal(k2, (N, L, D), dtype=jnp.float32)
    mask = (jax.random.uniform(k3, (N, L)) > 0.5).astype(jnp.float32)
    for norm in (False, True):
        for masked in (True, False):
            out = jax.block_until_ready(
                masked_mse(pred, mask, target,
                           norm_pix_loss=norm, pix_masked=masked))
            ref = _masked_mse_ref(pred, mask, target,
                                  norm_pix_loss=norm, pix_masked=masked)
            ok &= bool(jnp.allclose(out, ref, rtol=2e-4, atol=1e-5))

    # Case 2: ragged rows + deliberately small explicit tile to exercise
    # multi-step accumulation, per-split reset, and zero-padded tail handling.
    k1, k2, k3 = jax.random.split(jax.random.PRNGKey(1), 3)
    N, L, D = 3, 50, 96
    pred = jax.random.normal(k1, (N, L, D), dtype=jnp.float32)
    target = jax.random.normal(k2, (N, L, D), dtype=jnp.float32)
    mask = (jax.random.uniform(k3, (N, L)) > 0.3).astype(jnp.float32)
    for norm in (False, True):
        out = jax.block_until_ready(
            masked_mse(pred, mask, target,
                       norm_pix_loss=norm, pix_masked=True, row_tile=16))
        ref = _masked_mse_ref(pred, mask, target,
                              norm_pix_loss=norm, pix_masked=True)
        ok &= bool(jnp.allclose(out, ref, rtol=2e-4, atol=1e-5))

    # Case 3: bf16 inputs streamed in native dtype (upcast only inside kernel).
    k1, k2, k3 = jax.random.split(jax.random.PRNGKey(2), 3)
    N, L, D = 2, 32, 128
    pred = jax.random.normal(k1, (N, L, D), dtype=jnp.bfloat16)
    target = jax.random.normal(k2, (N, L, D), dtype=jnp.bfloat16)
    mask = (jax.random.uniform(k3, (N, L)) > 0.5).astype(jnp.float32)
    out = jax.block_until_ready(
        masked_mse(pred, mask, target, norm_pix_loss=True, pix_masked=True))
    ref = _masked_mse_ref(pred, mask, target, norm_pix_loss=True, pix_masked=True)
    ok &= bool(jnp.allclose(out, ref, rtol=2e-4, atol=1e-5))

    if ok:
        print("KERNEL_OK")
</pallas_src>

<mosaic_0001>
module attributes {stable_mosaic.version = 11 : i64} {
  func.func @_masked_mse_kernel(%arg0: i32, %arg1: i32, %arg2: memref<256x128xf32, #tpu.memory_space<vmem>>, %arg3: memref<256x128xf32, #tpu.memory_space<vmem>>, %arg4: memref<256x1xf32, #tpu.memory_space<vmem>>, %arg5: memref<1x1x1xf32, #tpu.memory_space<vmem>>, %arg6: memref<1x1x1xf32, #tpu.memory_space<vmem>>) attributes {dimension_semantics = [#tpu.dimension_semantics<parallel>, #tpu.dimension_semantics<arbitrary>], iteration_bounds = array<i64: 2, 1>, scalar_prefetch = 0 : i64, scratch_operands = 0 : i64, tpu.core_type = #tpu.core_type<tc>, window_params = [{transform_indices = @transform_0, window_bounds = array<i64: 256, 128>}, {transform_indices = @transform_1, window_bounds = array<i64: 256, 128>}, {transform_indices = @transform_2, window_bounds = array<i64: 256, 1>}, {transform_indices = @transform_3, window_bounds = array<i64: 1, 1, 1>}, {transform_indices = @transform_4, window_bounds = array<i64: 1, 1, 1>}]} {
    %c0_i32 = arith.constant 0 : i32
    %0 = arith.cmpi eq, %arg1, %c0_i32 : i32
    %1 = arith.extui %0 : i1 to i32
    %c0_i32_0 = arith.constant 0 : i32
    %2 = arith.cmpi ne, %1, %c0_i32_0 : i32
    scf.if %2 {
      %cst_19 = arith.constant 0.000000e+00 : f32
      %26 = vector.broadcast %cst_19 : f32 to vector<1x1x1xf32>
      %c0_20 = arith.constant 0 : index
      %c0_21 = arith.constant 0 : index
      %c0_22 = arith.constant 0 : index
      %27 = vector.load %arg5[%c0_20, %c0_21, %c0_22] : memref<1x1x1xf32, #tpu.memory_space<vmem>>, vector<1x1x1xf32>
      tpu.vector_store %arg5[%c0_20, %c0_21, %c0_22], %26 {strides = array<i32>} : memref<1x1x1xf32, #tpu.memory_space<vmem>>, vector<1x1x1xf32>,
      %cst_23 = arith.constant 0.000000e+00 : f32
      %28 = vector.broadcast %cst_23 : f32 to vector<1x1x1xf32>
      %c0_24 = arith.constant 0 : index
      %c0_25 = arith.constant 0 : index
      %c0_26 = arith.constant 0 : index
      %29 = vector.load %arg6[%c0_24, %c0_25, %c0_26] : memref<1x1x1xf32, #tpu.memory_space<vmem>>, vector<1x1x1xf32>
      tpu.vector_store %arg6[%c0_24, %c0_25, %c0_26], %28 {strides = array<i32>} : memref<1x1x1xf32, #tpu.memory_space<vmem>>, vector<1x1x1xf32>,
    } else {
    }
    %c0 = arith.constant 0 : index
    %c0_1 = arith.constant 0 : index
    %3 = vector.load %arg2[%c0, %c0_1] : memref<256x128xf32, #tpu.memory_space<vmem>>, vector<256x128xf32>
    %c0_2 = arith.constant 0 : index
    %c0_3 = arith.constant 0 : index
    %4 = vector.load %arg3[%c0_2, %c0_3] : memref<256x128xf32, #tpu.memory_space<vmem>>, vector<256x128xf32>
    %c0_4 = arith.constant 0 : index
    %c0_5 = arith.constant 0 : index
    %5 = vector.load %arg4[%c0_4, %c0_5] : memref<256x1xf32, #tpu.memory_space<vmem>>, vector<256x1xf32>
    %6 = arith.subf %3, %4 : vector<256x128xf32>
    %7 = arith.mulf %6, %6 : vector<256x128xf32>
    %c0_6 = arith.constant 0 : index
    %c0_7 = arith.constant 0 : index
    %c0_8 = arith.constant 0 : index
    %8 = vector.load %arg5[%c0_6, %c0_7, %c0_8] : memref<1x1x1xf32, #tpu.memory_space<vmem>>, vector<1x1x1xf32>
    %9 = vector.broadcast %5 : vector<256x1xf32> to vector<256x128xf32>
    %10 = arith.mulf %7, %9 : vector<256x128xf32>
    %11 = vector.shape_cast %10 : vector<256x128xf32> to vector<1x256x128xf32>
    %cst = arith.constant dense<0.000000e+00> : vector<1xf32>
    %12 = vector.multi_reduction <add>, %11, %cst [1, 2] : vector<1x256x128xf32> to vector<1xf32>
    %13 = vector.shape_cast %12 : vector<1xf32> to vector<1x1x1xf32>
    %14 = vector.extract %13[0, 0, 0] : f32 from vector<1x1x1xf32>
    %15 = vector.broadcast %14 : f32 to vector<1x1x1xf32>
    %16 = arith.addf %8, %15 : vector<1x1x1xf32>
    %c0_9 = arith.constant 0 : index
    %c0_10 = arith.constant 0 : index
    %c0_11 = arith.constant 0 : index
    %17 = vector.load %arg5[%c0_9, %c0_10, %c0_11] : memref<1x1x1xf32, #tpu.memory_space<vmem>>, vector<1x1x1xf32>
    tpu.vector_store %arg5[%c0_9, %c0_10, %c0_11], %16 {strides = array<i32>} : memref<1x1x1xf32, #tpu.memory_space<vmem>>, vector<1x1x1xf32>,
    %c0_12 = arith.constant 0 : index
    %c0_13 = arith.constant 0 : index
    %c0_14 = arith.constant 0 : index
    %18 = vector.load %arg6[%c0_12, %c0_13, %c0_14] : memref<1x1x1xf32, #tpu.memory_space<vmem>>, vector<1x1x1xf32>
    %19 = vector.shape_cast %5 : vector<256x1xf32> to vector<1x256x1xf32>
    %cst_15 = arith.constant dense<0.000000e+00> : vector<1xf32>
    %20 = vector.multi_reduction <add>, %19, %cst_15 [1, 2] : vector<1x256x1xf32> to vector<1xf32>
    %21 = vector.shape_cast %20 : vector<1xf32> to vector<1x1x1xf32>
    %22 = vector.extract %21[0, 0, 0] : f32 from vector<1x1x1xf32>
    %23 = vector.broadcast %22 : f32 to vector<1x1x1xf32>
    %24 = arith.addf %18, %23 : vector<1x1x1xf32>
    %c0_16 = arith.constant 0 : index
    %c0_17 = arith.constant 0 : index
    %c0_18 = arith.constant 0 : index
    %25 = vector.load %arg6[%c0_16, %c0_17, %c0_18] : memref<1x1x1xf32, #tpu.memory_space<vmem>>, vector<1x1x1xf32>
    tpu.vector_store %arg6[%c0_16, %c0_17, %c0_18], %24 {strides = array<i32>} : memref<1x1x1xf32, #tpu.memory_space<vmem>>, vector<1x1x1xf32>,
    return
  }
  func.func @transform_0(%arg0: i32, %arg1: i32) -> (i32, i32) {
    %c1_i32 = arith.constant 1 : i32
    %0 = arith.muli %arg0, %c1_i32 : i32
    %1 = arith.addi %0, %arg1 : i32
    %c0_i32 = arith.constant 0 : i32
    %c0_i32_0 = arith.constant 0 : i32
    return %1, %c0_i32 : i32, i32
  }
  func.func @transform_1(%arg0: i32, %arg1: i32) -> (i32, i32) {
    %c1_i32 = arith.constant 1 : i32
    %0 = arith.muli %arg0, %c1_i32 : i32
    %1 = arith.addi %0, %arg1 : i32
    %c0_i32 = arith.constant 0 : i32
    %c0_i32_0 = arith.constant 0 : i32
    return %1, %c0_i32 : i32, i32
  }
  func.func @transform_2(%arg0: i32, %arg1: i32) -> (i32, i32) {
    %c1_i32 = arith.constant 1 : i32
    %0 = arith.muli %arg0, %c1_i32 : i32
    %1 = arith.addi %0, %arg1 : i32
    %c0_i32 = arith.constant 0 : i32
    %c0_i32_0 = arith.constant 0 : i32
    return %1, %c0_i32 : i32, i32
  }
  func.func @transform_3(%arg0: i32, %arg1: i32) -> (i32, i32, i32) {
    %c0_i32 = arith.constant 0 : i32
    %c0_i32_0 = arith.constant 0 : i32
    %c0_i32_1 = arith.constant 0 : i32
    return %arg0, %c0_i32, %c0_i32_0 : i32, i32, i32
  }
  func.func @transform_4(%arg0: i32, %arg1: i32) -> (i32, i32, i32) {
    %c0_i32 = arith.constant 0 : i32
    %c0_i32_0 = arith.constant 0 : i32
    %c0_i32_1 = arith.constant 0 : i32
    return %arg0, %c0_i32, %c0_i32_0 : i32, i32, i32
  }
}

</mosaic_0001>

<llo_original>
// kernel: tpu_custom_call.1
$region0: #{tpu_custom_call.1}
  #allocation0 [shape = 'u32[]', space=smem, size = 0x4, offset = 0x4, fixed_abs, tag = 'smem constant byte address 0x4 - core index']
  #allocation1 [shape = 'u32[144,128]{1,0:T(1,128)}', space=vmem, size = 0x12000, scoped, tag = 'internal scratch']
  %s0 = inlined_call_operand.vmem [shape: f32[512,128], index: 0, kind: input, shape index: {}]
  %s1 = inlined_call_operand.hbm [shape: f32[512,128], index: 1, kind: input, shape index: {}]
  %s2 = inlined_call_operand.vmem [shape: f32[512,1], index: 2, kind: input, shape index: {}]
  %s3 = inlined_call_operand.vmem [shape: f32[2,1,1], index: 3, kind: output, shape index: {0}]
  %s4 = inlined_call_operand.vmem [shape: f32[2,1,1], index: 4, kind: output, shape index: {1}]
  %5 = xla_tuple %s3, %s4
  %s6 = sld [smem:[#allocation0]]
  $region61: #{tpu_custom_call.1} parent=0
    _
  %s8 = ssub.s32 1, %s6
  %s9 = scalar_select 0, %s8, %s6
  $region1: #{tpu_custom_call.1} parent=0
    #allocation2 [shape = 'u8[262144]{0}', space=vmem, size = 0x40000, scoped, tag = 'input window, operand 1']
    #allocation3 [shape = 's32[2]{0}', space=sflag, size = 0x8, scoped, tag = 'scoped memory for tpu_custom_call.1']
    %10 = vsyncpa [#allocation3], 0
    %s11 = scalar_lea.sflag [#allocation3], 1
    %12 = vsyncpa %s11, 0
    loop: start=0, step=1, limit=4
    $region2: #{tpu_custom_call.1} parent=1 // loop_pre_header
      _
    $region3: #{tpu_custom_call.1} parent=1 // loop_header
      %s14 = sphi 0, %s18
      %p15 = scmp.ge.s32.totalorder %s14, 4
      %s21 = sphi 0, %s33
      %s22 = sphi 0, %s29
      %s23 = sphi 0, %s21
      %s24 = sphi 0, %s22
      %s25 = sphi 0, %s23
      %s26 = sphi 0, %s24
      %s38 = sphi 0, %s40
      %s41 = sphi 0, %s38
      %s42 = sphi 0, %s41
      %s58 = sphi 0, %s42
      %s66 = sphi 0, %s68
      %s69 = sphi 0, %s66
      %s70 = sphi 0, %s69
      %s86 = sphi 0, %s70
      %s94 = sphi 0, %s96
      %s97 = sphi 0, %s94
      %s98 = sphi 0, %s97
      %s114 = sphi 0, %s98
      %s120 = sphi 0, %s122
      %s123 = sphi 0, %s120
      %s124 = sphi 0, %s123
      %s140 = sphi 0, %s124
      %s146 = sphi 0, %s148
      %s149 = sphi 0, %s146
      %s150 = sphi 0, %s149
      %s166 = sphi 0, %s150
    $region4: #{tpu_custom_call.1} parent=1 // loop_header_branch
      %17 = sbr.rel (%p15) target = $region8
    $region5: #{tpu_custom_call.1} parent=1 // loop_body
      %s19 = ssub.s32 %s14, 1
      %s20 = ssub.s32 %s14, 2
      %s27 = sadd.s32 1, %s22
      %p28 = scmp.ge.s32.totalorder %s27, 1
      %s29 = scalar_select %p28, 0, %s27
      %s30 = sadd.s32 1, %s21
      %s31 = scalar_select %p28, %s30, %s21
      %p32 = scmp.ge.s32.totalorder %s31, 2
      %s33 = scalar_select %p32, 0, %s31
      %s34 = sadd.s32 %s21, %s22
      %s35 = sadd.s32 %s33, %s29
      %s36 = ssub.s32 %s34, %s35
      %p37 = scmp.eq.s32.totalorder %s36, 0
      %s39 = sadd.s32 %s38, 1
      %s40 = scalar_select %p37, %s38, %s39
      %p43 = pneg %p37
      %p44 = scmp.eq.s32.totalorder %s14, 1
      %p45 = por %p43, %p44
      %p46 = scmp.ne.s32.totalorder %s38, %s41
      %p47 = scmp.eq.s32.totalorder %s14, 0
      %p48 = por %p46, %p47
      %p49 = scmp.ne.s32.totalorder %s38, %s41
      %p50 = scmp.eq.s32.totalorder %s19, 1
      %p51 = por %p49, %p50
      %p52 = scmp.ne.s32.totalorder %s41, %s42
      %p53 = scmp.eq.s32.totalorder %s19, 0
      %p54 = por %p52, %p53
      %p55 = scmp.ne.s32.totalorder %s41, %s42
      %p56 = scmp.eq.s32.totalorder %s20, 1
      %p57 = por %p55, %p56
      %p59 = scmp.ne.s32.totalorder %s42, %s58
      %p60 = scmp.eq.s32.totalorder %s20, 0
      %p61 = por %p59, %p60
      %s62 = sadd.s32 %s21, %s22
      %s63 = sadd.s32 %s33, %s29
      %s64 = ssub.s32 %s62, %s63
      %p65 = scmp.eq.s32.totalorder %s64, 0
      %s67 = sadd.s32 %s66, 1
      %s68 = scalar_select %p65, %s66, %s67
      %p71 = pneg %p65
      %p72 = scmp.eq.s32.totalorder %s14, 1
      %p73 = por %p71, %p72
      %p74 = scmp.ne.s32.totalorder %s66, %s69
      %p75 = scmp.eq.s32.totalorder %s14, 0
      %p76 = por %p74, %p75
      %p77 = scmp.ne.s32.totalorder %s66, %s69
      %p78 = scmp.eq.s32.totalorder %s19, 1
      %p79 = por %p77, %p78
      %p80 = scmp.ne.s32.totalorder %s69, %s70
      %p81 = scmp.eq.s32.totalorder %s19, 0
      %p82 = por %p80, %p81
      %p83 = scmp.ne.s32.totalorder %s69, %s70
      %p84 = scmp.eq.s32.totalorder %s20, 1
      %p85 = por %p83, %p84
      %p87 = scmp.ne.s32.totalorder %s70, %s86
      %p88 = scmp.eq.s32.totalorder %s20, 0
      %p89 = por %p87, %p88
      %s90 = sadd.s32 %s21, %s22
      %s91 = sadd.s32 %s33, %s29
      %s92 = ssub.s32 %s90, %s91
      %p93 = scmp.eq.s32.totalorder %s92, 0
      %s95 = sadd.s32 %s94, 1
      %s96 = scalar_select %p93, %s94, %s95
      %p99 = pneg %p93
      %p100 = scmp.eq.s32.totalorder %s14, 1
      %p101 = por %p99, %p100
      %p102 = scmp.ne.s32.totalorder %s94, %s97
      %p103 = scmp.eq.s32.totalorder %s14, 0
      %p104 = por %p102, %p103
      %p105 = scmp.ne.s32.totalorder %s94, %s97
      %p106 = scmp.eq.s32.totalorder %s19, 1
      %p107 = por %p105, %p106
      %p108 = scmp.ne.s32.totalorder %s97, %s98
      %p109 = scmp.eq.s32.totalorder %s19, 0
      %p110 = por %p108, %p109
      %p111 = scmp.ne.s32.totalorder %s97, %s98
      %p112 = scmp.eq.s32.totalorder %s20, 1
      %p113 = por %p111, %p112
      %p115 = scmp.ne.s32.totalorder %s98, %s114
      %p116 = scmp.eq.s32.totalorder %s20, 0
      %p117 = por %p115, %p116
      %s118 = ssub.s32 %s21, %s33
      %p119 = scmp.eq.s32.totalorder %s118, 0
      %s121 = sadd.s32 %s120, 1
      %s122 = scalar_select %p119, %s120, %s121
      %p125 = pneg %p119
      %p126 = scmp.eq.s32.totalorder %s14, 1
      %p127 = por %p125, %p126
      %p128 = scmp.ne.s32.totalorder %s120, %s123
      %p129 = scmp.eq.s32.totalorder %s14, 0
      %p130 = por %p128, %p129
      %p131 = scmp.ne.s32.totalorder %s120, %s123
      %p132 = scmp.eq.s32.totalorder %s19, 1
      %p133 = por %p131, %p132
      %p134 = scmp.ne.s32.totalorder %s123, %s124
      %p135 = scmp.eq.s32.totalorder %s19, 0
      %p136 = por %p134, %p135
      %p137 = scmp.ne.s32.totalorder %s123, %s124
      %p138 = scmp.eq.s32.totalorder %s20, 1
      %p139 = por %p137, %p138
      %p141 = scmp.ne.s32.totalorder %s124, %s140
      %p142 = scmp.eq.s32.totalorder %s20, 0
      %p143 = por %p141, %p142
      %s144 = ssub.s32 %s21, %s33
      %p145 = scmp.eq.s32.totalorder %s144, 0
      %s147 = sadd.s32 %s146, 1
      %s148 = scalar_select %p145, %s146, %s147
      %p151 = pneg %p145
      %p152 = scmp.eq.s32.totalorder %s14, 1
      %p153 = por %p151, %p152
      %p154 = scmp.ne.s32.totalorder %s146, %s149
      %p155 = scmp.eq.s32.totalorder %s14, 0
      %p156 = por %p154, %p155
      %p157 = scmp.ne.s32.totalorder %s146, %s149
      %p158 = scmp.eq.s32.totalorder %s19, 1
      %p159 = por %p157, %p158
      %p160 = scmp.ne.s32.totalorder %s149, %s150
      %p161 = scmp.eq.s32.totalorder %s19, 0
      %p162 = por %p160, %p161
      %p163 = scmp.ne.s32.totalorder %s149, %s150
      %p164 = scmp.eq.s32.totalorder %s20, 1
      %p165 = por %p163, %p164
      %p167 = scmp.ne.s32.totalorder %s150, %s166
      %p168 = scmp.eq.s32.totalorder %s20, 0
      %p169 = por %p167, %p168
      %p170 = scmp.le.s32.totalorder 1, %s14
      %p171 = scmp.lt.s32.totalorder %s14, 3
      %p172 = pnand %p170, %p171
      %p173 = pneg %p172
      // Predicated region
      $region9: #{tpu_custom_call.1} parent=5 // pred_check
        _
      $region10: #{tpu_custom_call.1} parent=5 // pred_check_branch
        %175 = sbr.rel (%p172) target = $region12
      $region11: #{tpu_custom_call.1} parent=5 // pred_region
        %s176 = ssub.s32 %s14, 1
      $region12: #{tpu_custom_call.1} parent=5 // pred_fallthru
        _
      %p177 = scmp.lt.s32.totalorder %s14, 2
      // Predicated region
      $region13: #{tpu_custom_call.1} parent=5 // pred_check
        %p178 = pneg %p177
      $region14: #{tpu_custom_call.1} parent=5 // pred_check_branch
        %180 = sbr.rel (%p178) target = $region16
      $region15: #{tpu_custom_call.1} parent=5 // pred_region
        // Predicated region
        $region17: #{tpu_custom_call.1} parent=15 // pred_check
          %p181 = pneg %p48
        $region18: #{tpu_custom_call.1} parent=15 // pred_check_branch
          %183 = sbr.rel (%p181) target = $region20
        $region19: #{tpu_custom_call.1} parent=15 // pred_region
          %s184 = sadd.s32 %s21, %s22
          %s185 = smul.u32 32, %s184
          %p186 = scmp.lt.s32.totalorder %s185, 63
          %s187 = scalar_select %p186, %s185, 63
          %s188 = smul.addr %s187, 8
          %s189 = scalar_lea.vmem %s0, %s188
          %s190 = sadd.s32 %s21, %s22
          %s191 = smul.u32 32, %s190
        $region20: #{tpu_custom_call.1} parent=15 // pred_fallthru
          _
        // Predicated region
        $region21: #{tpu_custom_call.1} parent=15 // pred_check
          %p192 = pneg %p76
        $region22: #{tpu_custom_call.1} parent=15 // pred_check_branch
          %194 = sbr.rel (%p192) target = $region24
        $region23: #{tpu_custom_call.1} parent=15 // pred_region
          %s195 = sand.u32 %s66, 1
          %s196 = scalar_lea.sflag [#allocation3], %s195
          %s197 = sand.u32 %s66, 1
          %s198 = smul.addr %s197, 256
          %s199 = scalar_lea.vmem [#allocation2], %s198
          %s200 = sadd.s32 %s21, %s22
          %s201 = smul.u32 32, %s200
          %s203 = ssub.s32 4096, 4096
          %204 = vsyncadd %s196, %s203
          %s205 = smul.addr %s201, 128
          %s206 = scalar_lea.hbm %s1, %s205
          %s207 = sshll.u32 %s199, 4
          %s208 = int_to_ptr.vmem [resolvable:$true] %s207
          %213 = dma.hbm_to_vmem [thread:$0]  %s206, 4096, %s208, %s196, 128, 128, 8
        $region24: #{tpu_custom_call.1} parent=15 // pred_fallthru
          _
        // Predicated region
        $region25: #{tpu_custom_call.1} parent=15 // pred_check
          %p214 = pneg %p104
        $region26: #{tpu_custom_call.1} parent=15 // pred_check_branch
          %216 = sbr.rel (%p214) target = $region28
        $region27: #{tpu_custom_call.1} parent=15 // pred_region
          %s217 = sadd.s32 %s21, %s22
          %s218 = smul.u32 32, %s217
          %p219 = scmp.lt.s32.totalorder %s218, 63
          %s220 = scalar_select %p219, %s218, 63
          %s221 = smul.addr %s220, 8
          %s222 = scalar_lea.vmem %s2, %s221
          %s223 = sadd.s32 %s21, %s22
          %s224 = smul.u32 32, %s223
        $region28: #{tpu_custom_call.1} parent=15 // pred_fallthru
          _
      $region16: #{tpu_custom_call.1} parent=5 // pred_fallthru
        _
      %p225 = scmp.le.s32.totalorder 1, %s14
      %p226 = scmp.lt.s32.totalorder %s14, 3
      %p227 = pnand %p225, %p226
      %p228 = pneg %p227
      // Predicated region
      $region29: #{tpu_custom_call.1} parent=5 // pred_check
        _
      $region30: #{tpu_custom_call.1} parent=5 // pred_check_branch
        %230 = sbr.rel (%p227) target = $region32
      $region31: #{tpu_custom_call.1} parent=5 // pred_region
        %s231 = ssub.s32 %s14, 1
        %s232 = sand.u32 %s69, 1
        %s233 = scalar_lea.sflag [#allocation3], %s232
        %s234 = sand.u32 %s69, 1
        %s235 = smul.addr %s234, 256
        %s236 = scalar_lea.vmem [#allocation2], %s235
        // Predicated region
        $region33: #{tpu_custom_call.1} parent=31 // pred_check
          %p237 = pneg %p82
        $region34: #{tpu_custom_call.1} parent=31 // pred_check_branch
          %239 = sbr.rel (%p237) target = $region36
        $region35: #{tpu_custom_call.1} parent=31 // pred_region
          %240 = dma.done %s233, 4096
        $region36: #{tpu_custom_call.1} parent=31 // pred_fallthru
          _
        %s241 = sadd.s32 %s23, %s24
        %s242 = smul.u32 32, %s241
        %p243 = scmp.lt.s32.totalorder %s242, 63
        %s244 = scalar_select %p243, %s242, 63
        %s245 = smul.addr %s244, 8
        %s246 = scalar_lea.vmem %s0, %s245
        %p247 = pneg %p54
        %p248 = pneg %p51
        %s249 = sand.u32 %s69, 1
        %s250 = scalar_lea.sflag [#allocation3], %s249
        %s251 = sand.u32 %s69, 1
        %s252 = smul.addr %s251, 256
        %s253 = scalar_lea.vmem [#allocation2], %s252
        %p254 = pneg %p82
        %p255 = pneg %p79
        %s256 = sadd.s32 %s23, %s24
        %s257 = smul.u32 32, %s256
        %p258 = scmp.lt.s32.totalorder %s257, 63
        %s259 = scalar_select %p258, %s257, 63
        %s260 = smul.addr %s259, 8
        %s261 = scalar_lea.vmem %s2, %s260
        %p262 = pneg %p110
        %p263 = pneg %p107
        %p264 = pneg %p136
        %p265 = pneg %p133
        %p266 = scmp.lt.s32.totalorder %s23, 1
        %s267 = scalar_select %p266, %s23, 1
        %s268 = scalar_lea.vmem %s3, %s267
        %p269 = pneg %p162
        %p270 = pneg %p159
        %p271 = scmp.lt.s32.totalorder %s23, 1
        %s272 = scalar_select %p271, %s23, 1
        %s273 = scalar_lea.vmem %s4, %s272
        %s274 = sadd.s32 %s23, %s24
        %s275 = smul.u32 32, %s274
        %p276 = scmp.lt.s32.totalorder %s275, 63
        %s277 = scalar_select %p276, %s275, 63
        %s278 = smul.addr %s277, 8
        %s279 = scalar_lea.vmem %s0, %s278
        %s280 = sadd.s32 %s23, %s24
        %s281 = smul.u32 32, %s280
        %s282 = sadd.s32 %s23, %s24
        %s283 = smul.u32 32, %s282
        %s284 = sadd.s32 %s23, %s24
        %s285 = smul.u32 32, %s284
        %p286 = scmp.lt.s32.totalorder %s285, 63
        %s287 = scalar_select %p286, %s285, 63
        %s288 = smul.addr %s287, 8
        %s289 = scalar_lea.vmem %s2, %s288
        %s290 = sadd.s32 %s23, %s24
        %s291 = smul.u32 32, %s290
        %p292 = scmp.lt.s32.totalorder %s23, 1
        %s293 = scalar_select %p292, %s23, 1
        %s294 = scalar_lea.vmem %s3, %s293
        %p295 = scmp.lt.s32.totalorder %s23, 1
        %s296 = scalar_select %p295, %s23, 1
        %s297 = scalar_lea.vmem %s4, %s296
        %p298 = scmp.eq.s32.totalorder %s24, 0
        // Predicated region
        $region37: #{tpu_custom_call.1} parent=31 // pred_check
          %p299 = pneg %p298
        $region38: #{tpu_custom_call.1} parent=31 // pred_check_branch
          %301 = sbr.rel (%p299) target = $region40
        $region39: #{tpu_custom_call.1} parent=31 // pred_region
          %vm302 = vcmask 0
          %303 = vst.msk [vmem:[%s294] sm:$0x1] %vm302, 0.0
          %304 = vst.msk [vmem:[%s297] sm:$0x1] %vm302, 0.0
        $region40: #{tpu_custom_call.1} parent=31 // pred_fallthru
          _
        %v305 = vld [vmem:[%s279] sm:$0xff]
        %v306 = vld [vmem:[%s279 + $0x8] sm:$0xff]
        %v307 = vld [vmem:[%s279 + $0x10] sm:$0xff]
        %v308 = vld [vmem:[%s279 + $0x18] sm:$0xff]
        %v309 = vld [vmem:[%s279 + $0x20] sm:$0xff]
        %v310 = vld [vmem:[%s279 + $0x28] sm:$0xff]
        %v311 = vld [vmem:[%s279 + $0x30] sm:$0xff]
        %v312 = vld [vmem:[%s279 + $0x38] sm:$0xff]
        %v313 = vld [vmem:[%s279 + $0x40] sm:$0xff]
        %v314 = vld [vmem:[%s279 + $0x48] sm:$0xff]
        %v315 = vld [vmem:[%s279 + $0x50] sm:$0xff]
        %v316 = vld [vmem:[%s279 + $0x58] sm:$0xff]
        %v317 = vld [vmem:[%s279 + $0x60] sm:$0xff]
        %v318 = vld [vmem:[%s279 + $0x68] sm:$0xff]
        %v319 = vld [vmem:[%s279 + $0x70] sm:$0xff]
        %v320 = vld [vmem:[%s279 + $0x78] sm:$0xff]
        %v321 = vld [vmem:[%s279 + $0x80] sm:$0xff]
        %v322 = vld [vmem:[%s279 + $0x88] sm:$0xff]
        %v323 = vld [vmem:[%s279 + $0x90] sm:$0xff]
        %v324 = vld [vmem:[%s279 + $0x98] sm:$0xff]
        %v325 = vld [vmem:[%s279 + $0xa0] sm:$0xff]
        %v326 = vld [vmem:[%s279 + $0xa8] sm:$0xff]
        %v327 = vld [vmem:[%s279 + $0xb0] sm:$0xff]
        %v328 = vld [vmem:[%s279 + $0xb8] sm:$0xff]
        %v329 = vld [vmem:[%s279 + $0xc0] sm:$0xff]
        %v330 = vld [vmem:[%s279 + $0xc8] sm:$0xff]
        %v331 = vld [vmem:[%s279 + $0xd0] sm:$0xff]
        %v332 = vld [vmem:[%s279 + $0xd8] sm:$0xff]
        %v333 = vld [vmem:[%s279 + $0xe0] sm:$0xff]
        %v334 = vld [vmem:[%s279 + $0xe8] sm:$0xff]
        %v335 = vld [vmem:[%s279 + $0xf0] sm:$0xff]
        %v336 = vld [vmem:[%s279 + $0xf8] sm:$0xff]
        %v337 = vld [vmem:[%s236] sm:$0xff]
        %v338 = vld [vmem:[%s236 + $0x8] sm:$0xff]
        %v339 = vld [vmem:[%s236 + $0x10] sm:$0xff]
        %v340 = vld [vmem:[%s236 + $0x18] sm:$0xff]
        %v341 = vld [vmem:[%s236 + $0x20] sm:$0xff]
        %v342 = vld [vmem:[%s236 + $0x28] sm:$0xff]
        %v343 = vld [vmem:[%s236 + $0x30] sm:$0xff]
        %v344 = vld [vmem:[%s236 + $0x38] sm:$0xff]
        %v345 = vld [vmem:[%s236 + $0x40] sm:$0xff]
        %v346 = vld [vmem:[%s236 + $0x48] sm:$0xff]
        %v347 = vld [vmem:[%s236 + $0x50] sm:$0xff]
        %v348 = vld [vmem:[%s236 + $0x58] sm:$0xff]
        %v349 = vld [vmem:[%s236 + $0x60] sm:$0xff]
        %v350 = vld [vmem:[%s236 + $0x68] sm:$0xff]
        %v351 = vld [vmem:[%s236 + $0x70] sm:$0xff]
        %v352 = vld [vmem:[%s236 + $0x78] sm:$0xff]
        %v353 = vld [vmem:[%s236 + $0x80] sm:$0xff]
        %v354 = vld [vmem:[%s236 + $0x88] sm:$0xff]
        %v355 = vld [vmem:[%s236 + $0x90] sm:$0xff]
        %v356 = vld [vmem:[%s236 + $0x98] sm:$0xff]
        %v357 = vld [vmem:[%s236 + $0xa0] sm:$0xff]
        %v358 = vld [vmem:[%s236 + $0xa8] sm:$0xff]
        %v359 = vld [vmem:[%s236 + $0xb0] sm:$0xff]
        %v360 = vld [vmem:[%s236 + $0xb8] sm:$0xff]
        %v361 = vld [vmem:[%s236 + $0xc0] sm:$0xff]
        %v362 = vld [vmem:[%s236 + $0xc8] sm:$0xff]
        %v363 = vld [vmem:[%s236 + $0xd0] sm:$0xff]
        %v364 = vld [vmem:[%s236 + $0xd8] sm:$0xff]
        %v365 = vld [vmem:[%s236 + $0xe0] sm:$0xff]
        %v366 = vld [vmem:[%s236 + $0xe8] sm:$0xff]
        %v367 = vld [vmem:[%s236 + $0xf0] sm:$0xff]
        %v368 = vld [vmem:[%s236 + $0xf8] sm:$0xff]
        %v369 = vld [vmem:[%s289] sm:$0xff]
        %v370 = vld [vmem:[%s289 + $0x8] sm:$0xff]
        %v371 = vld [vmem:[%s289 + $0x10] sm:$0xff]
        %v372 = vld [vmem:[%s289 + $0x18] sm:$0xff]
        %v373 = vld [vmem:[%s289 + $0x20] sm:$0xff]
        %v374 = vld [vmem:[%s289 + $0x28] sm:$0xff]
        %v375 = vld [vmem:[%s289 + $0x30] sm:$0xff]
        %v376 = vld [vmem:[%s289 + $0x38] sm:$0xff]
        %v377 = vld [vmem:[%s289 + $0x40] sm:$0xff]
        %v378 = vld [vmem:[%s289 + $0x48] sm:$0xff]
        %v379 = vld [vmem:[%s289 + $0x50] sm:$0xff]
        %v380 = vld [vmem:[%s289 + $0x58] sm:$0xff]
        %v381 = vld [vmem:[%s289 + $0x60] sm:$0xff]
        %v382 = vld [vmem:[%s289 + $0x68] sm:$0xff]
        %v383 = vld [vmem:[%s289 + $0x70] sm:$0xff]
        %v384 = vld [vmem:[%s289 + $0x78] sm:$0xff]
        %v385 = vld [vmem:[%s289 + $0x80] sm:$0xff]
        %v386 = vld [vmem:[%s289 + $0x88] sm:$0xff]
        %v387 = vld [vmem:[%s289 + $0x90] sm:$0xff]
        %v388 = vld [vmem:[%s289 + $0x98] sm:$0xff]
        %v389 = vld [vmem:[%s289 + $0xa0] sm:$0xff]
        %v390 = vld [vmem:[%s289 + $0xa8] sm:$0xff]
        %v391 = vld [vmem:[%s289 + $0xb0] sm:$0xff]
        %v392 = vld [vmem:[%s289 + $0xb8] sm:$0xff]
        %v393 = vld [vmem:[%s289 + $0xc0] sm:$0xff]
        %v394 = vld [vmem:[%s289 + $0xc8] sm:$0xff]
        %v395 = vld [vmem:[%s289 + $0xd0] sm:$0xff]
        %v396 = vld [vmem:[%s289 + $0xd8] sm:$0xff]
        %v397 = vld [vmem:[%s289 + $0xe0] sm:$0xff]
        %v398 = vld [vmem:[%s289 + $0xe8] sm:$0xff]
        %v399 = vld [vmem:[%s289 + $0xf0] sm:$0xff]
        %v400 = vld [vmem:[%s289 + $0xf8] sm:$0xff]
        %v401 = vsub.f32 %v305, %v337
        %v402 = vsub.f32 %v306, %v338
        %v403 = vsub.f32 %v307, %v339
        %v404 = vsub.f32 %v308, %v340
        %v405 = vsub.f32 %v309, %v341
        %v406 = vsub.f32 %v310, %v342
        %v407 = vsub.f32 %v311, %v343
        %v408 = vsub.f32 %v312, %v344
        %v409 = vsub.f32 %v313, %v345
        %v410 = vsub.f32 %v314, %v346
        %v411 = vsub.f32 %v315, %v347
        %v412 = vsub.f32 %v316, %v348
        %v413 = vsub.f32 %v317, %v349
        %v414 = vsub.f32 %v318, %v350
        %v415 = vsub.f32 %v319, %v351
        %v416 = vsub.f32 %v320, %v352
        %v417 = vsub.f32 %v321, %v353
        %v418 = vsub.f32 %v322, %v354
        %v419 = vsub.f32 %v323, %v355
        %v420 = vsub.f32 %v324, %v356
        %v421 = vsub.f32 %v325, %v357
        %v422 = vsub.f32 %v326, %v358
        %v423 = vsub.f32 %v327, %v359
        %v424 = vsub.f32 %v328, %v360
        %v425 = vsub.f32 %v329, %v361
        %v426 = vsub.f32 %v330, %v362
        %v427 = vsub.f32 %v331, %v363
        %v428 = vsub.f32 %v332, %v364
        %v429 = vsub.f32 %v333, %v365
        %v430 = vsub.f32 %v334, %v366
        %v431 = vsub.f32 %v335, %v367
        %v432 = vsub.f32 %v336, %v368
        %v433 = vmul.f32 %v401, %v401
        %v434 = vmul.f32 %v402, %v402
        %v435 = vmul.f32 %v403, %v403
        %v436 = vmul.f32 %v404, %v404
        %v437 = vmul.f32 %v405, %v405
        %v438 = vmul.f32 %v406, %v406
        %v439 = vmul.f32 %v407, %v407
        %v440 = vmul.f32 %v408, %v408
        %v441 = vmul.f32 %v409, %v409
        %v442 = vmul.f32 %v410, %v410
        %v443 = vmul.f32 %v411, %v411
        %v444 = vmul.f32 %v412, %v412
        %v445 = vmul.f32 %v413, %v413
        %v446 = vmul.f32 %v414, %v414
        %v447 = vmul.f32 %v415, %v415
        %v448 = vmul.f32 %v416, %v416
        %v449 = vmul.f32 %v417, %v417
        %v450 = vmul.f32 %v418, %v418
        %v451 = vmul.f32 %v419, %v419
        %v452 = vmul.f32 %v420, %v420
        %v453 = vmul.f32 %v421, %v421
        %v454 = vmul.f32 %v422, %v422
        %v455 = vmul.f32 %v423, %v423
        %v456 = vmul.f32 %v424, %v424
        %v457 = vmul.f32 %v425, %v425
        %v458 = vmul.f32 %v426, %v426
        %v459 = vmul.f32 %v427, %v427
        %v460 = vmul.f32 %v428, %v428
        %v461 = vmul.f32 %v429, %v429
        %v462 = vmul.f32 %v430, %v430
        %v463 = vmul.f32 %v431, %v431
        %v464 = vmul.f32 %v432, %v432
        %v465 = vld [vmem:[%s294] sm:$0x1]
        %467 = vset.pattern.permute.xlu0 0
        %468 = vperm.xlu0 %467, %v369
        %v469 = vpop.permute.xlu0 %468
        %472 = vset.pattern.permute.xlu0 0
        %473 = vperm.xlu0 %472, %v370
        %v474 = vpop.permute.xlu0 %473
        %477 = vset.pattern.permute.xlu0 0
        %478 = vperm.xlu0 %477, %v371
        %v479 = vpop.permute.xlu0 %478
        %482 = vset.pattern.permute.xlu0 0
        %483 = vperm.xlu0 %482, %v372
        %v484 = vpop.permute.xlu0 %483
        %487 = vset.pattern.permute.xlu0 0
        %488 = vperm.xlu0 %487, %v373
        %v489 = vpop.permute.xlu0 %488
        %492 = vset.pattern.permute.xlu0 0
        %493 = vperm.xlu0 %492, %v374
        %v494 = vpop.permute.xlu0 %493
        %497 = vset.pattern.permute.xlu0 0
        %498 = vperm.xlu0 %497, %v375
        %v499 = vpop.permute.xlu0 %498
        %502 = vset.pattern.permute.xlu0 0
        %503 = vperm.xlu0 %502, %v376
        %v504 = vpop.permute.xlu0 %503
        %507 = vset.pattern.permute.xlu0 0
        %508 = vperm.xlu0 %507, %v377
        %v509 = vpop.permute.xlu0 %508
        %512 = vset.pattern.permute.xlu0 0
        %513 = vperm.xlu0 %512, %v378
        %v514 = vpop.permute.xlu0 %513
        %517 = vset.pattern.permute.xlu0 0
        %518 = vperm.xlu0 %517, %v379
        %v519 = vpop.permute.xlu0 %518
        %522 = vset.pattern.permute.xlu0 0
        %523 = vperm.xlu0 %522, %v380
        %v524 = vpop.permute.xlu0 %523
        %527 = vset.pattern.permute.xlu0 0
        %528 = vperm.xlu0 %527, %v381
        %v529 = vpop.permute.xlu0 %528
        %532 = vset.pattern.permute.xlu0 0
        %533 = vperm.xlu0 %532, %v382
        %v534 = vpop.permute.xlu0 %533
        %537 = vset.pattern.permute.xlu0 0
        %538 = vperm.xlu0 %537, %v383
        %v539 = vpop.permute.xlu0 %538
        %542 = vset.pattern.permute.xlu0 0
        %543 = vperm.xlu0 %542, %v384
        %v544 = vpop.permute.xlu0 %543
        %547 = vset.pattern.permute.xlu0 0
        %548 = vperm.xlu0 %547, %v385
        %v549 = vpop.permute.xlu0 %548
        %552 = vset.pattern.permute.xlu0 0
        %553 = vperm.xlu0 %552, %v386
        %v554 = vpop.permute.xlu0 %553
        %557 = vset.pattern.permute.xlu0 0
        %558 = vperm.xlu0 %557, %v387
        %v559 = vpop.permute.xlu0 %558
        %562 = vset.pattern.permute.xlu0 0
        %563 = vperm.xlu0 %562, %v388
        %v564 = vpop.permute.xlu0 %563
        %567 = vset.pattern.permute.xlu0 0
        %568 = vperm.xlu0 %567, %v389
        %v569 = vpop.permute.xlu0 %568
        %572 = vset.pattern.permute.xlu0 0
        %573 = vperm.xlu0 %572, %v390
        %v574 = vpop.permute.xlu0 %573
        %577 = vset.pattern.permute.xlu0 0
        %578 = vperm.xlu0 %577, %v391
        %v579 = vpop.permute.xlu0 %578
        %582 = vset.pattern.permute.xlu0 0
        %583 = vperm.xlu0 %582, %v392
        %v584 = vpop.permute.xlu0 %583
        %587 = vset.pattern.permute.xlu0 0
        %588 = vperm.xlu0 %587, %v393
        %v589 = vpop.permute.xlu0 %588
        %592 = vset.pattern.permute.xlu0 0
        %593 = vperm.xlu0 %592, %v394
        %v594 = vpop.permute.xlu0 %593
        %597 = vset.pattern.permute.xlu0 0
        %598 = vperm.xlu0 %597, %v395
        %v599 = vpop.permute.xlu0 %598
        %602 = vset.pattern.permute.xlu0 0
        %603 = vperm.xlu0 %602, %v396
        %v604 = vpop.permute.xlu0 %603
        %607 = vset.pattern.permute.xlu0 0
        %608 = vperm.xlu0 %607, %v397
        %v609 = vpop.permute.xlu0 %608
        %612 = vset.pattern.permute.xlu0 0
        %613 = vperm.xlu0 %612, %v398
        %v614 = vpop.permute.xlu0 %613
        %617 = vset.pattern.permute.xlu0 0
        %618 = vperm.xlu0 %617, %v399
        %v619 = vpop.permute.xlu0 %618
        %622 = vset.pattern.permute.xlu0 0
        %623 = vperm.xlu0 %622, %v400
        %v624 = vpop.permute.xlu0 %623
        %v626 = vmul.f32 %v433, %v469
        %v627 = vmul.f32 %v434, %v474
        %v628 = vmul.f32 %v435, %v479
        %v629 = vmul.f32 %v436, %v484
        %v630 = vmul.f32 %v437, %v489
        %v631 = vmul.f32 %v438, %v494
        %v632 = vmul.f32 %v439, %v499
        %v633 = vmul.f32 %v440, %v504
        %v634 = vmul.f32 %v441, %v509
        %v635 = vmul.f32 %v442, %v514
        %v636 = vmul.f32 %v443, %v519
        %v637 = vmul.f32 %v444, %v524
        %v638 = vmul.f32 %v445, %v529
        %v639 = vmul.f32 %v446, %v534
        %v640 = vmul.f32 %v447, %v539
        %v641 = vmul.f32 %v448, %v544
        %v642 = vmul.f32 %v449, %v549
        %v643 = vmul.f32 %v450, %v554
        %v644 = vmul.f32 %v451, %v559
        %v645 = vmul.f32 %v452, %v564
        %v646 = vmul.f32 %v453, %v569
        %v647 = vmul.f32 %v454, %v574
        %v648 = vmul.f32 %v455, %v579
        %v649 = vmul.f32 %v456, %v584
        %v650 = vmul.f32 %v457, %v589
        %v651 = vmul.f32 %v458, %v594
        %v652 = vmul.f32 %v459, %v599
        %v653 = vmul.f32 %v460, %v604
        %v654 = vmul.f32 %v461, %v609
        %v655 = vmul.f32 %v462, %v614
        %v656 = vmul.f32 %v463, %v619
        %v657 = vmul.f32 %v464, %v624
        %v658 = vadd.f32 %v626, %v627
        %v659 = vadd.f32 %v658, %v628
        %v660 = vadd.f32 %v659, %v629
        %v661 = vadd.f32 %v660, %v630
        %v662 = vadd.f32 %v661, %v631
        %v663 = vadd.f32 %v662, %v632
        %v664 = vadd.f32 %v663, %v633
        %v665 = vadd.f32 %v664, %v634
        %v666 = vadd.f32 %v665, %v635
        %v667 = vadd.f32 %v666, %v636
        %v668 = vadd.f32 %v667, %v637
        %v669 = vadd.f32 %v668, %v638
        %v670 = vadd.f32 %v669, %v639
        %v671 = vadd.f32 %v670, %v640
        %v672 = vadd.f32 %v671, %v641
        %v673 = vadd.f32 %v672, %v642
        %v674 = vadd.f32 %v673, %v643
        %v675 = vadd.f32 %v674, %v644
        %v676 = vadd.f32 %v675, %v645
        %v677 = vadd.f32 %v676, %v646
        %v678 = vadd.f32 %v677, %v647
        %v679 = vadd.f32 %v678, %v648
        %v680 = vadd.f32 %v679, %v649
        %v681 = vadd.f32 %v680, %v650
        %v682 = vadd.f32 %v681, %v651
        %v683 = vadd.f32 %v682, %v652
        %v684 = vadd.f32 %v683, %v653
        %v685 = vadd.f32 %v684, %v654
        %v686 = vadd.f32 %v685, %v655
        %v687 = vadd.f32 %v686, %v656
        %v688 = vadd.f32 %v687, %v657
        %689 = vadd.xlane.f32.xlu0 %v688
        %v690 = vpop.xlane.xlu0 %689
        %v691 = vrot.slane %v690, 4
        %v692 = vadd.f32 %v690, %v691
        %v693 = vrot.slane %v692, 2
        %v694 = vadd.f32 %v692, %v693
        %v695 = vrot.slane %v694, 1
        %v696 = vadd.f32 %v694, %v695
        %s697 = vtos %v696
        %v698 = vstv %s697
        %v699 = vadd.f32 %v465, %v698
        %vm700 = vcmask 0
        %701 = vst.msk [vmem:[%s294] sm:$0x1] %vm700, %v699
        %v702 = vld [vmem:[%s297] sm:$0x1]
        %vm703 = vcmask 7168
        %v704 = vsel %vm703, %v369, 0.0
        %v705 = vsel %vm703, %v370, 0.0
        %v706 = vadd.f32 %v704, %v705
        %v707 = vsel %vm703, %v371, 0.0
        %v708 = vadd.f32 %v706, %v707
        %v709 = vsel %vm703, %v372, 0.0
        %v710 = vadd.f32 %v708, %v709
        %v711 = vsel %vm703, %v373, 0.0
        %v712 = vadd.f32 %v710, %v711
        %v713 = vsel %vm703, %v374, 0.0
        %v714 = vadd.f32 %v712, %v713
        %v715 = vsel %vm703, %v375, 0.0
        %v716 = vadd.f32 %v714, %v715
        %v717 = vsel %vm703, %v376, 0.0
        %v718 = vadd.f32 %v716, %v717
        %v719 = vsel %vm703, %v377, 0.0
        %v720 = vadd.f32 %v718, %v719
        %v721 = vsel %vm703, %v378, 0.0
        %v722 = vadd.f32 %v720, %v721
        %v723 = vsel %vm703, %v379, 0.0
        %v724 = vadd.f32 %v722, %v723
        %v725 = vsel %vm703, %v380, 0.0
        %v726 = vadd.f32 %v724, %v725
        %v727 = vsel %vm703, %v381, 0.0
        %v728 = vadd.f32 %v726, %v727
        %v729 = vsel %vm703, %v382, 0.0
        %v730 = vadd.f32 %v728, %v729
        %v731 = vsel %vm703, %v383, 0.0
        %v732 = vadd.f32 %v730, %v731
        %v733 = vsel %vm703, %v384, 0.0
        %v734 = vadd.f32 %v732, %v733
        %v735 = vsel %vm703, %v385, 0.0
        %v736 = vadd.f32 %v734, %v735
        %v737 = vsel %vm703, %v386, 0.0
        %v738 = vadd.f32 %v736, %v737
        %v739 = vsel %vm703, %v387, 0.0
        %v740 = vadd.f32 %v738, %v739
        %v741 = vsel %vm703, %v388, 0.0
        %v742 = vadd.f32 %v740, %v741
        %v743 = vsel %vm703, %v389, 0.0
        %v744 = vadd.f32 %v742, %v743
        %v745 = vsel %vm703, %v390, 0.0
        %v746 = vadd.f32 %v744, %v745
        %v747 = vsel %vm703, %v391, 0.0
        %v748 = vadd.f32 %v746, %v747
        %v749 = vsel %vm703, %v392, 0.0
        %v750 = vadd.f32 %v748, %v749
        %v751 = vsel %vm703, %v393, 0.0
        %v752 = vadd.f32 %v750, %v751
        %v753 = vsel %vm703, %v394, 0.0
        %v754 = vadd.f32 %v752, %v753
        %v755 = vsel %vm703, %v395, 0.0
        %v756 = vadd.f32 %v754, %v755
        %v757 = vsel %vm703, %v396, 0.0
        %v758 = vadd.f32 %v756, %v757
        %v759 = vsel %vm703, %v397, 0.0
        %v760 = vadd.f32 %v758, %v759
        %v761 = vsel %vm703, %v398, 0.0
        %v762 = vadd.f32 %v760, %v761
        %v763 = vsel %vm703, %v399, 0.0
        %v764 = vadd.f32 %v762, %v763
        %v765 = vsel %vm703, %v400, 0.0
        %v766 = vadd.f32 %v764, %v765
        %767 = vadd.xlane.f32.xlu0 %v766
        %v768 = vpop.xlane.xlu0 %767
        %v769 = vrot.slane %v768, 4
        %v770 = vadd.f32 %v768, %v769
        %v771 = vrot.slane %v770, 2
        %v772 = vadd.f32 %v770, %v771
        %v773 = vrot.slane %v772, 1
        %v774 = vadd.f32 %v772, %v773
        %s775 = vtos %v774
        %v776 = vstv %s775
        %v777 = vadd.f32 %v702, %v776
        %778 = vst.msk [vmem:[%s297] sm:$0x1] %vm700, %v777
        %p779 = scmp.lt.s32.totalorder %s23, 1
        %s780 = scalar_select %p779, %s23, 1
        %s781 = scalar_lea.vmem %s3, %s780
        %p782 = scmp.lt.s32.totalorder %s23, 1
        %s783 = scalar_select %p782, %s23, 1
        %s784 = scalar_lea.vmem %s4, %s783
        // Predicated region
        $region41: #{tpu_custom_call.1} parent=31 // pred_check
          %p785 = pneg %p133
        $region42: #{tpu_custom_call.1} parent=31 // pred_check_branch
          %787 = sbr.rel (%p785) target = $region44
        $region43: #{tpu_custom_call.1} parent=31 // pred_region
          _
        $region44: #{tpu_custom_call.1} parent=31 // pred_fallthru
          _
        // Predicated region
        $region45: #{tpu_custom_call.1} parent=31 // pred_check
          %p788 = pneg %p159
        $region46: #{tpu_custom_call.1} parent=31 // pred_check_branch
          %790 = sbr.rel (%p788) target = $region48
        $region47: #{tpu_custom_call.1} parent=31 // pred_region
          _
        $region48: #{tpu_custom_call.1} parent=31 // pred_fallthru
          _
      $region32: #{tpu_custom_call.1} parent=5 // pred_fallthru
        _
      %p791 = scmp.le.s32.totalorder 2, %s14
      // Predicated region
      $region49: #{tpu_custom_call.1} parent=5 // pred_check
        %p792 = pneg %p791
      $region50: #{tpu_custom_call.1} parent=5 // pred_check_branch
        %794 = sbr.rel (%p792) target = $region52
      $region51: #{tpu_custom_call.1} parent=5 // pred_region
        %s795 = ssub.s32 %s14, 2
        // Predicated region
        $region53: #{tpu_custom_call.1} parent=51 // pred_check
          %p796 = pneg %p139
        $region54: #{tpu_custom_call.1} parent=51 // pred_check_branch
          %798 = sbr.rel (%p796) target = $region56
        $region55: #{tpu_custom_call.1} parent=51 // pred_region
          %p799 = scmp.lt.s32.totalorder %s25, 1
          %s800 = scalar_select %p799, %s25, 1
          %s801 = scalar_lea.vmem %s3, %s800
        $region56: #{tpu_custom_call.1} parent=51 // pred_fallthru
          _
        // Predicated region
        $region57: #{tpu_custom_call.1} parent=51 // pred_check
          %p802 = pneg %p165
        $region58: #{tpu_custom_call.1} parent=51 // pred_check_branch
          %804 = sbr.rel (%p802) target = $region60
        $region59: #{tpu_custom_call.1} parent=51 // pred_region
          %p805 = scmp.lt.s32.totalorder %s25, 1
          %s806 = scalar_select %p805, %s25, 1
          %s807 = scalar_lea.vmem %s4, %s806
        $region60: #{tpu_custom_call.1} parent=51 // pred_fallthru
          _
      $region52: #{tpu_custom_call.1} parent=5 // pred_fallthru
        _
    $region6: #{tpu_custom_call.1} parent=1 // loop_footer
      %s18 = sadd.s32 1, %s14
    $region7: #{tpu_custom_call.1} parent=1 // loop_footer_branch
      %13 = sbr.rel target = $region3
    $region8: #{tpu_custom_call.1} parent=1 // loop_exit
      _
    %808 = vsyncpa [#allocation3], 1
    %s809 = scalar_lea.sflag [#allocation3], 1
    %810 = vsyncpa %s809, 1

</llo_original>
